<compile_context>
chip_gen: v6e
topology: v6e:2x2x1
jax: 0.10.0
libtpu: 0.0.40
codegen_flags: <defaults>
</compile_context>

<pallas_src>
import functools

import jax
import jax.numpy as jnp
from jax import lax
from jax.experimental import pallas as pl
from jax.experimental.pallas import tpu as pltpu

IN_DIM = 128
H1_DIM = 64
H2_DIM = 32
OUT_DIM = 2

# Packed (batch-pair) widths.
IN2 = 2 * IN_DIM    # 256
H1_2 = 2 * H1_DIM   # 128
H2_2 = 2 * H2_DIM   # 64
OUT2 = 2 * OUT_DIM  # 4


def _mlp_kernel(x_ref, w1_ref, b1_ref, w2_ref, b2_ref, w3_ref, b3_ref, o_ref,
                *, chunk, n_chunks):
    # Weights are bf16 (MXU-native); biases are f32 and add onto the f32 MXU
    # accumulator.  All are tiny and VMEM-resident across grid steps.
    w1 = w1_ref[...]
    w2 = w2_ref[...]
    w3 = w3_ref[...]
    b1 = b1_ref[...]
    b2 = b2_ref[...]
    b3 = b3_ref[...]

    def body(c, carry):
        off = pl.multiple_of(c * chunk, chunk)
        # f32 -> bf16 cast rides idle VPU slots (input stays a single f32 HBM pass).
        x = x_ref[pl.ds(off, chunk), :].astype(jnp.bfloat16)
        h1 = jnp.dot(x, w1, preferred_element_type=jnp.float32) + b1
        h1 = jnp.tanh(h1).astype(jnp.bfloat16)
        h2 = jnp.dot(h1, w2, preferred_element_type=jnp.float32) + b2
        h2 = jnp.tanh(h2).astype(jnp.bfloat16)
        out = jnp.dot(h2, w3, preferred_element_type=jnp.float32) + b3
        o_ref[pl.ds(off, chunk), :] = out.astype(o_ref.dtype)
        return carry

    # Unrolled so the LLO scheduler sees all chunks and can keep the MXU fed
    # across layer boundaries.
    lax.fori_loop(0, n_chunks, body, None, unroll=True)
    # TODO(synk): if a v7x/v6e bundle dump shows the EUP as the binding slot,
    # cast the pre-activations to bf16 before jnp.tanh (bf16 EUP ~2x); keep f32
    # tanh on v5e (no bf16 EUP there).


def _round_up(n, m):
    return ((n + m - 1) // m) * m


def _block_diag2(w):
    """[k, n] -> [[w, 0], [0, w]] of shape [2k, 2n]."""
    z = jnp.zeros_like(w)
    top = jnp.concatenate([w, z], axis=1)
    bot = jnp.concatenate([z, w], axis=1)
    return jnp.concatenate([top, bot], axis=0)


@functools.partial(jax.jit, static_argnames=("block_b",))
def prediction_model_forward(x, params, *, block_b=4096):
    """x: [B, 128] float32 -> [B, 2] float32.

    block_b is the batch-tile size in ORIGINAL rows (tune per chip: ~2048-4096
    on v7x, 4096-8192 on v5e/v6e).
    """
    w1, b1, w2, b2, w3, b3 = params
    B = x.shape[0]

    # Odd batch: pad a single row (rare path; everything else is copy-free).
    if B % 2 != 0:
        x = jnp.concatenate([x, jnp.zeros((1, IN_DIM), x.dtype)], axis=0)
    B_even = x.shape[0]
    B2 = B_even // 2

    # Free reshape of contiguous memory: packed row i = [x[2i], x[2i+1]].
    x_p = x.reshape(B2, IN2)

    # Block-diagonal packed bf16 weights + tiled f32 biases (tiny; built on device).
    w1p = _block_diag2(w1.astype(jnp.bfloat16))                    # [256, 128]
    w2p = _block_diag2(w2.astype(jnp.bfloat16))                    # [128, 64]
    w3p = _block_diag2(w3.astype(jnp.bfloat16))                    # [64, 4]
    b1p = jnp.concatenate([b1, b1], axis=-1).astype(jnp.float32)   # [1, 128]
    b2p = jnp.concatenate([b2, b2], axis=-1).astype(jnp.float32)   # [1, 64]
    b3p = jnp.concatenate([b3, b3], axis=-1).astype(jnp.float32)   # [1, 4]

    # Batch tile in packed rows: multiple of 8, no bigger than (padded) batch.
    bp = max(8, (min(block_b // 2, _round_up(B2, 8)) // 8) * 8)
    if bp > 256:
        bp = (bp // 256) * 256
        chunk = 256          # sub-chunk size inside the kernel
    else:
        chunk = bp
    n_chunks = bp // chunk

    grid = (pl.cdiv(B2, bp),)  # ragged batch -> masked partial last block

    kernel = functools.partial(_mlp_kernel, chunk=chunk, n_chunks=n_chunks)

    in_specs = [
        pl.BlockSpec((bp, IN2), lambda i: (i, 0)),
        # Weights/biases: constant (0, 0) block index -> fetched once, stay
        # VMEM-resident across grid steps (~0.1 MiB total).
        pl.BlockSpec((IN2, H1_2), lambda i: (0, 0)),
        pl.BlockSpec((1, H1_2), lambda i: (0, 0)),
        pl.BlockSpec((H1_2, H2_2), lambda i: (0, 0)),
        pl.BlockSpec((1, H2_2), lambda i: (0, 0)),
        pl.BlockSpec((H2_2, OUT2), lambda i: (0, 0)),
        pl.BlockSpec((1, OUT2), lambda i: (0, 0)),
    ]
    # TODO(synk): on v5e, if the trace shows exposed x DMA waits, add
    # pipeline_mode=pl.Buffered(3) to the x BlockSpec (in_specs[0]).
    out_specs = pl.BlockSpec((bp, OUT2), lambda i: (i, 0))

    out_p = pl.pallas_call(
        kernel,
        out_shape=jax.ShapeDtypeStruct((B2, OUT2), jnp.float32),
        grid_spec=pltpu.PrefetchScalarGridSpec(
            num_scalar_prefetch=0,
            grid=grid,
            in_specs=in_specs,
            out_specs=out_specs,
        ),
        compiler_params=pltpu.CompilerParams(
            dimension_semantics=("parallel",),
            # Real usage at the default tile: x block (2 MiB x2) + lane-padded
            # output block (1 MiB x2) + weights + small chunk scratch ~= 7 MiB.
            # 32 MiB leaves headroom even on v7x (64 MiB physical).
            vmem_limit_bytes=32 * 1024 * 1024,
        ),
    )(x_p, w1p, b1p, w2p, b2p, w3p, b3p)

    # Free reshape back to per-row predictions; drop the odd-pad row if any.
    return out_p.reshape(B_even, OUT_DIM)[:B]


def init_params(key):
    """Deterministic init mimicking PyTorch nn.Linear default (uniform +/- 1/sqrt(fan_in))."""
    ks = jax.random.split(key, 6)

    def linear(kw, kb, fan_in, fan_out):
        bound = 1.0 / jnp.sqrt(fan_in)
        # Stored as [in, out] so the forward does x @ W.
        w = jax.random.uniform(kw, (fan_in, fan_out), jnp.float32, -bound, bound)
        b = jax.random.uniform(kb, (1, fan_out), jnp.float32, -bound, bound)
        return w, b

    w1, b1 = linear(ks[0], ks[1], IN_DIM, H1_DIM)
    w2, b2 = linear(ks[2], ks[3], H1_DIM, H2_DIM)
    w3, b3 = linear(ks[4], ks[5], H2_DIM, OUT_DIM)
    return (w1, b1, w2, b2, w3, b3)


def reference_forward(x, params):
    """Reference with the SAME bf16 inputs/weights + f32 accumulation as the kernel."""
    w1, b1, w2, b2, w3, b3 = params
    xb = x.astype(jnp.bfloat16)
    w1b, w2b, w3b = (w.astype(jnp.bfloat16) for w in (w1, w2, w3))
    h = jnp.tanh(jnp.dot(xb, w1b, preferred_element_type=jnp.float32) + b1)
    h = h.astype(jnp.bfloat16)
    h = jnp.tanh(jnp.dot(h, w2b, preferred_element_type=jnp.float32) + b2)
    h = h.astype(jnp.bfloat16)
    return jnp.dot(h, w3b, preferred_element_type=jnp.float32) + b3


if __name__ == "__main__":
    key = jax.random.PRNGKey(0)
    k_params, k_x = jax.random.split(key)
    params = init_params(k_params)

    # Ragged even batch: exercises the chunked inner loop, a multi-step grid,
    # and a masked partial last block.
    B = 1030
    x = jax.random.normal(k_x, (B, IN_DIM), jnp.float32)
    ref = reference_forward(x, params)

    for bb in (256, 1024):
        out = jax.block_until_ready(prediction_model_forward(x, params, block_b=bb))
        assert out.shape == (B, OUT_DIM), out.shape
        assert jnp.allclose(out, ref, atol=2e-2, rtol=2e-2), (
            f"mismatch vs reference at block_b={bb}")

    # Tiny odd batch: exercises the 1-row pad path and a single partial block.
    B_small = 9
    x_small = jax.random.normal(jax.random.PRNGKey(1), (B_small, IN_DIM), jnp.float32)
    out_small = jax.block_until_ready(prediction_model_forward(x_small, params))
    ref_small = reference_forward(x_small, params)
    assert out_small.shape == (B_small, OUT_DIM), out_small.shape
    assert jnp.allclose(out_small, ref_small, atol=2e-2, rtol=2e-2), "mismatch (small batch)"

    print("KERNEL_OK")
</pallas_src>

<mosaic_0001>
module attributes {stable_mosaic.version = 11 : i64} {
  func.func @_mlp_kernel(%arg0: i32, %arg1: memref<128x256xf32, #tpu.memory_space<vmem>>, %arg2: memref<256x128xbf16, #tpu.memory_space<vmem>>, %arg3: memref<1x128xf32, #tpu.memory_space<vmem>>, %arg4: memref<128x64xbf16, #tpu.memory_space<vmem>>, %arg5: memref<1x64xf32, #tpu.memory_space<vmem>>, %arg6: memref<64x4xbf16, #tpu.memory_space<vmem>>, %arg7: memref<1x4xf32, #tpu.memory_space<vmem>>, %arg8: memref<128x4xf32, #tpu.memory_space<vmem>>) attributes {dimension_semantics = [#tpu.dimension_semantics<parallel>], iteration_bounds = array<i64: 5>, scalar_prefetch = 0 : i64, scratch_operands = 0 : i64, tpu.core_type = #tpu.core_type<tc>, window_params = [{transform_indices = @transform_0, window_bounds = array<i64: 128, 256>}, {pipeline_mode = #tpu.pipeline_mode<synchronous>, transform_indices = @transform_1, window_bounds = array<i64: 256, 128>}, {pipeline_mode = #tpu.pipeline_mode<synchronous>, transform_indices = @transform_2, window_bounds = array<i64: 1, 128>}, {pipeline_mode = #tpu.pipeline_mode<synchronous>, transform_indices = @transform_3, window_bounds = array<i64: 128, 64>}, {pipeline_mode = #tpu.pipeline_mode<synchronous>, transform_indices = @transform_4, window_bounds = array<i64: 1, 64>}, {pipeline_mode = #tpu.pipeline_mode<synchronous>, transform_indices = @transform_5, window_bounds = array<i64: 64, 4>}, {pipeline_mode = #tpu.pipeline_mode<synchronous>, transform_indices = @transform_6, window_bounds = array<i64: 1, 4>}, {transform_indices = @transform_7, window_bounds = array<i64: 128, 4>}]} {
    %c0 = arith.constant 0 : index
    %c0_0 = arith.constant 0 : index
    %0 = vector.load %arg2[%c0, %c0_0] : memref<256x128xbf16, #tpu.memory_space<vmem>>, vector<256x128xbf16>
    %c0_1 = arith.constant 0 : index
    %c0_2 = arith.constant 0 : index
    %1 = vector.load %arg4[%c0_1, %c0_2] : memref<128x64xbf16, #tpu.memory_space<vmem>>, vector<128x64xbf16>
    %c0_3 = arith.constant 0 : index
    %c0_4 = arith.constant 0 : index
    %2 = vector.load %arg6[%c0_3, %c0_4] : memref<64x4xbf16, #tpu.memory_space<vmem>>, vector<64x4xbf16>
    %c0_5 = arith.constant 0 : index
    %c0_6 = arith.constant 0 : index
    %3 = vector.load %arg3[%c0_5, %c0_6] : memref<1x128xf32, #tpu.memory_space<vmem>>, vector<1x128xf32>
    %c0_7 = arith.constant 0 : index
    %c0_8 = arith.constant 0 : index
    %4 = vector.load %arg5[%c0_7, %c0_8] : memref<1x64xf32, #tpu.memory_space<vmem>>, vector<1x64xf32>
    %c0_9 = arith.constant 0 : index
    %c0_10 = arith.constant 0 : index
    %5 = vector.load %arg7[%c0_9, %c0_10] : memref<1x4xf32, #tpu.memory_space<vmem>>, vector<1x4xf32>
    %c0_i32 = arith.constant 0 : i32
    %c128_i32 = arith.constant 128 : i32
    %6 = arith.muli %c0_i32, %c128_i32 : i32
    %7 = tpu.assume_multiple %6, 128 : i32
    %8 = arith.index_cast %7 : i32 to index
    %c0_11 = arith.constant 0 : index
    %9 = vector.load %arg1[%8, %c0_11] : memref<128x256xf32, #tpu.memory_space<vmem>>, vector<128x256xf32>
    %10 = arith.truncf %9 : vector<128x256xf32> to vector<128x256xbf16>
    %cst = arith.constant dense<0.000000e+00> : vector<128x128xf32>
    %11 = tpu.matmul %10, %0, %cst {dimension_numbers = #tpu.dot_dimension_numbers<[1], [0], [0], [1], [0, 0, 1, 1], [], []>} : vector<128x256xbf16>, vector<256x128xbf16>, vector<128x128xf32> -> vector<128x128xf32>
    %12 = vector.broadcast %3 : vector<1x128xf32> to vector<128x128xf32>
    %13 = arith.addf %11, %12 : vector<128x128xf32>
    %14 = math.tanh %13 : vector<128x128xf32>
    %15 = arith.truncf %14 : vector<128x128xf32> to vector<128x128xbf16>
    %cst_12 = arith.constant dense<0.000000e+00> : vector<128x64xf32>
    %16 = tpu.matmul %15, %1, %cst_12 {dimension_numbers = #tpu.dot_dimension_numbers<[1], [0], [0], [1], [0, 0, 1, 1], [], []>} : vector<128x128xbf16>, vector<128x64xbf16>, vector<128x64xf32> -> vector<128x64xf32>
    %17 = vector.broadcast %4 : vector<1x64xf32> to vector<128x64xf32>
    %18 = arith.addf %16, %17 : vector<128x64xf32>
    %19 = math.tanh %18 : vector<128x64xf32>
    %20 = arith.truncf %19 : vector<128x64xf32> to vector<128x64xbf16>
    %cst_13 = arith.constant dense<0.000000e+00> : vector<128x4xf32>
    %21 = tpu.matmul %20, %2, %cst_13 {dimension_numbers = #tpu.dot_dimension_numbers<[1], [0], [0], [1], [0, 0, 1, 1], [], []>} : vector<128x64xbf16>, vector<64x4xbf16>, vector<128x4xf32> -> vector<128x4xf32>
    %22 = vector.broadcast %5 : vector<1x4xf32> to vector<128x4xf32>
    %23 = arith.addf %21, %22 : vector<128x4xf32>
    %24 = arith.index_cast %7 : i32 to index
    %c0_14 = arith.constant 0 : index
    %25 = vector.load %arg8[%24, %c0_14] : memref<128x4xf32, #tpu.memory_space<vmem>>, vector<128x4xf32>
    tpu.vector_store %arg8[%24, %c0_14], %23 {strides = array<i32>} : memref<128x4xf32, #tpu.memory_space<vmem>>, vector<128x4xf32>,
    %c1_i32 = arith.constant 1 : i32
    return
  }
  func.func @transform_0(%arg0: i32) -> (i32, i32) {
    %c0_i32 = arith.constant 0 : i32
    %c0_i32_0 = arith.constant 0 : i32
    return %arg0, %c0_i32 : i32, i32
  }
  func.func @transform_1(%arg0: i32) -> (i32, i32) {
    %c0_i32 = arith.constant 0 : i32
    %c0_i32_0 = arith.constant 0 : i32
    %c0_i32_1 = arith.constant 0 : i32
    return %c0_i32, %c0_i32_0 : i32, i32
  }
  func.func @transform_2(%arg0: i32) -> (i32, i32) {
    %c0_i32 = arith.constant 0 : i32
    %c0_i32_0 = arith.constant 0 : i32
    %c0_i32_1 = arith.constant 0 : i32
    return %c0_i32, %c0_i32_0 : i32, i32
  }
  func.func @transform_3(%arg0: i32) -> (i32, i32) {
    %c0_i32 = arith.constant 0 : i32
    %c0_i32_0 = arith.constant 0 : i32
    %c0_i32_1 = arith.constant 0 : i32
    return %c0_i32, %c0_i32_0 : i32, i32
  }
  func.func @transform_4(%arg0: i32) -> (i32, i32) {
    %c0_i32 = arith.constant 0 : i32
    %c0_i32_0 = arith.constant 0 : i32
    %c0_i32_1 = arith.constant 0 : i32
    return %c0_i32, %c0_i32_0 : i32, i32
  }
  func.func @transform_5(%arg0: i32) -> (i32, i32) {
    %c0_i32 = arith.constant 0 : i32
    %c0_i32_0 = arith.constant 0 : i32
    %c0_i32_1 = arith.constant 0 : i32
    return %c0_i32, %c0_i32_0 : i32, i32
  }
  func.func @transform_6(%arg0: i32) -> (i32, i32) {
    %c0_i32 = arith.constant 0 : i32
    %c0_i32_0 = arith.constant 0 : i32
    %c0_i32_1 = arith.constant 0 : i32
    return %c0_i32, %c0_i32_0 : i32, i32
  }
  func.func @transform_7(%arg0: i32) -> (i32, i32) {
    %c0_i32 = arith.constant 0 : i32
    %c0_i32_0 = arith.constant 0 : i32
    return %arg0, %c0_i32 : i32, i32
  }
}

</mosaic_0001>

<llo_original>
// kernel: prediction_model_forward.1
$region0: #{prediction_model_forward.1}
  #allocation0 [shape = 'u32[]', space=smem, size = 0x4, offset = 0x4, fixed_abs, tag = 'smem constant byte address 0x4 - core index']
  #allocation1 [shape = 'u32[144,128]{1,0:T(1,128)}', space=vmem, size = 0x12000, scoped, tag = 'internal scratch']
  %s0 = inlined_call_operand.vmem [shape: f32[515,256], index: 0, kind: input, shape index: {}]
  %s1 = inlined_call_operand.vmem [shape: bf16[256,128], index: 1, kind: input, shape index: {}]
  %s2 = inlined_call_operand.vmem [shape: f32[1,128], index: 2, kind: input, shape index: {}]
  %s3 = inlined_call_operand.vmem [shape: bf16[128,64], index: 3, kind: input, shape index: {}]
  %s4 = inlined_call_operand.vmem [shape: f32[1,64], index: 4, kind: input, shape index: {}]
  %s5 = inlined_call_operand.vmem [shape: bf16[64,4], index: 5, kind: input, shape index: {}]
  %s6 = inlined_call_operand.vmem [shape: f32[1,4], index: 6, kind: input, shape index: {}]
  %s7 = inlined_call_operand.vmem [shape: f32[515,4], index: 7, kind: output, shape index: {}]
  %s8 = sld [smem:[#allocation0]]
  $region109: #{prediction_model_forward.1} parent=0
    _
  %s10 = ssub.s32 1, %s8
  %s11 = scalar_select 0, %s10, %s8
  $region1: #{prediction_model_forward.1} parent=0
    #allocation2 [shape = 'u8[131072]{0}', space=vmem, size = 0x20000, scoped, tag = 'output window, operand 0']
    loop: start=0, step=1, limit=7
    $region2: #{prediction_model_forward.1} parent=1 // loop_pre_header
      _
    $region3: #{prediction_model_forward.1} parent=1 // loop_header
      %s13 = sphi 0, %s17
      %p14 = scmp.ge.s32.totalorder %s13, 7
      %s23 = sphi 0, %s25
      %s26 = sphi 0, %s23
      %s27 = sphi 0, %s26
      %s43 = sphi 0, %s27
      %s47 = sphi 0, %s47
      %s49 = sphi 0, %s47
      %s50 = sphi 0, %s49
      %s64 = sphi 0, %s50
      %s68 = sphi 0, %s68
      %s70 = sphi 0, %s68
      %s71 = sphi 0, %s70
      %s85 = sphi 0, %s71
      %s89 = sphi 0, %s89
      %s91 = sphi 0, %s89
      %s92 = sphi 0, %s91
      %s106 = sphi 0, %s92
      %s110 = sphi 0, %s110
      %s112 = sphi 0, %s110
      %s113 = sphi 0, %s112
      %s127 = sphi 0, %s113
      %s131 = sphi 0, %s131
      %s133 = sphi 0, %s131
      %s134 = sphi 0, %s133
      %s148 = sphi 0, %s134
      %s152 = sphi 0, %s152
      %s154 = sphi 0, %s152
      %s155 = sphi 0, %s154
      %s169 = sphi 0, %s155
      %s175 = sphi 0, %s177
      %s178 = sphi 0, %s175
      %s179 = sphi 0, %s178
      %s195 = sphi 0, %s179
    $region4: #{prediction_model_forward.1} parent=1 // loop_header_branch
      %16 = sbr.rel (%p14) target = $region8
    $region5: #{prediction_model_forward.1} parent=1 // loop_body
      %s18 = ssub.s32 %s13, 1
      %s19 = ssub.s32 %s13, 2
      %s20 = sadd.s32 %s13, 1
      %s21 = ssub.s32 %s13, %s20
      %p22 = scmp.eq.s32.totalorder %s21, 0
      %s24 = sadd.s32 %s23, 1
      %s25 = scalar_select %p22, %s23, %s24
      %p28 = pneg %p22
      %p29 = scmp.eq.s32.totalorder %s13, 4
      %p30 = por %p28, %p29
      %p31 = scmp.ne.s32.totalorder %s23, %s26
      %p32 = scmp.eq.s32.totalorder %s13, 0
      %p33 = por %p31, %p32
      %p34 = scmp.ne.s32.totalorder %s23, %s26
      %p35 = scmp.eq.s32.totalorder %s18, 4
      %p36 = por %p34, %p35
      %p37 = scmp.ne.s32.totalorder %s26, %s27
      %p38 = scmp.eq.s32.totalorder %s18, 0
      %p39 = por %p37, %p38
      %p40 = scmp.ne.s32.totalorder %s26, %s27
      %p41 = scmp.eq.s32.totalorder %s19, 4
      %p42 = por %p40, %p41
      %p44 = scmp.ne.s32.totalorder %s27, %s43
      %p45 = scmp.eq.s32.totalorder %s19, 0
      %p46 = por %p44, %p45
      %s48 = sadd.s32 %s47, 1
      %p51 = scmp.eq.s32.totalorder %s13, 4
      %p52 = scmp.ne.s32.totalorder %s47, %s49
      %p53 = scmp.eq.s32.totalorder %s13, 0
      %p54 = por %p52, %p53
      %p55 = scmp.ne.s32.totalorder %s47, %s49
      %p56 = scmp.eq.s32.totalorder %s18, 4
      %p57 = por %p55, %p56
      %p58 = scmp.ne.s32.totalorder %s49, %s50
      %p59 = scmp.eq.s32.totalorder %s18, 0
      %p60 = por %p58, %p59
      %p61 = scmp.ne.s32.totalorder %s49, %s50
      %p62 = scmp.eq.s32.totalorder %s19, 4
      %p63 = por %p61, %p62
      %p65 = scmp.ne.s32.totalorder %s50, %s64
      %p66 = scmp.eq.s32.totalorder %s19, 0
      %p67 = por %p65, %p66
      %s69 = sadd.s32 %s68, 1
      %p72 = scmp.eq.s32.totalorder %s13, 4
      %p73 = scmp.ne.s32.totalorder %s68, %s70
      %p74 = scmp.eq.s32.totalorder %s13, 0
      %p75 = por %p73, %p74
      %p76 = scmp.ne.s32.totalorder %s68, %s70
      %p77 = scmp.eq.s32.totalorder %s18, 4
      %p78 = por %p76, %p77
      %p79 = scmp.ne.s32.totalorder %s70, %s71
      %p80 = scmp.eq.s32.totalorder %s18, 0
      %p81 = por %p79, %p80
      %p82 = scmp.ne.s32.totalorder %s70, %s71
      %p83 = scmp.eq.s32.totalorder %s19, 4
      %p84 = por %p82, %p83
      %p86 = scmp.ne.s32.totalorder %s71, %s85
      %p87 = scmp.eq.s32.totalorder %s19, 0
      %p88 = por %p86, %p87
      %s90 = sadd.s32 %s89, 1
      %p93 = scmp.eq.s32.totalorder %s13, 4
      %p94 = scmp.ne.s32.totalorder %s89, %s91
      %p95 = scmp.eq.s32.totalorder %s13, 0
      %p96 = por %p94, %p95
      %p97 = scmp.ne.s32.totalorder %s89, %s91
      %p98 = scmp.eq.s32.totalorder %s18, 4
      %p99 = por %p97, %p98
      %p100 = scmp.ne.s32.totalorder %s91, %s92
      %p101 = scmp.eq.s32.totalorder %s18, 0
      %p102 = por %p100, %p101
      %p103 = scmp.ne.s32.totalorder %s91, %s92
      %p104 = scmp.eq.s32.totalorder %s19, 4
      %p105 = por %p103, %p104
      %p107 = scmp.ne.s32.totalorder %s92, %s106
      %p108 = scmp.eq.s32.totalorder %s19, 0
      %p109 = por %p107, %p108
      %s111 = sadd.s32 %s110, 1
      %p114 = scmp.eq.s32.totalorder %s13, 4
      %p115 = scmp.ne.s32.totalorder %s110, %s112
      %p116 = scmp.eq.s32.totalorder %s13, 0
      %p117 = por %p115, %p116
      %p118 = scmp.ne.s32.totalorder %s110, %s112
      %p119 = scmp.eq.s32.totalorder %s18, 4
      %p120 = por %p118, %p119
      %p121 = scmp.ne.s32.totalorder %s112, %s113
      %p122 = scmp.eq.s32.totalorder %s18, 0
      %p123 = por %p121, %p122
      %p124 = scmp.ne.s32.totalorder %s112, %s113
      %p125 = scmp.eq.s32.totalorder %s19, 4
      %p126 = por %p124, %p125
      %p128 = scmp.ne.s32.totalorder %s113, %s127
      %p129 = scmp.eq.s32.totalorder %s19, 0
      %p130 = por %p128, %p129
      %s132 = sadd.s32 %s131, 1
      %p135 = scmp.eq.s32.totalorder %s13, 4
      %p136 = scmp.ne.s32.totalorder %s131, %s133
      %p137 = scmp.eq.s32.totalorder %s13, 0
      %p138 = por %p136, %p137
      %p139 = scmp.ne.s32.totalorder %s131, %s133
      %p140 = scmp.eq.s32.totalorder %s18, 4
      %p141 = por %p139, %p140
      %p142 = scmp.ne.s32.totalorder %s133, %s134
      %p143 = scmp.eq.s32.totalorder %s18, 0
      %p144 = por %p142, %p143
      %p145 = scmp.ne.s32.totalorder %s133, %s134
      %p146 = scmp.eq.s32.totalorder %s19, 4
      %p147 = por %p145, %p146
      %p149 = scmp.ne.s32.totalorder %s134, %s148
      %p150 = scmp.eq.s32.totalorder %s19, 0
      %p151 = por %p149, %p150
      %s153 = sadd.s32 %s152, 1
      %p156 = scmp.eq.s32.totalorder %s13, 4
      %p157 = scmp.ne.s32.totalorder %s152, %s154
      %p158 = scmp.eq.s32.totalorder %s13, 0
      %p159 = por %p157, %p158
      %p160 = scmp.ne.s32.totalorder %s152, %s154
      %p161 = scmp.eq.s32.totalorder %s18, 4
      %p162 = por %p160, %p161
      %p163 = scmp.ne.s32.totalorder %s154, %s155
      %p164 = scmp.eq.s32.totalorder %s18, 0
      %p165 = por %p163, %p164
      %p166 = scmp.ne.s32.totalorder %s154, %s155
      %p167 = scmp.eq.s32.totalorder %s19, 4
      %p168 = por %p166, %p167
      %p170 = scmp.ne.s32.totalorder %s155, %s169
      %p171 = scmp.eq.s32.totalorder %s19, 0
      %p172 = por %p170, %p171
      %s173 = ssub.s32 %s13, %s20
      %p174 = scmp.eq.s32.totalorder %s173, 0
      %s176 = sadd.s32 %s175, 1
      %s177 = scalar_select %p174, %s175, %s176
      %p180 = pneg %p174
      %p181 = scmp.eq.s32.totalorder %s13, 4
      %p182 = por %p180, %p181
      %p183 = scmp.ne.s32.totalorder %s175, %s178
      %p184 = scmp.eq.s32.totalorder %s13, 0
      %p185 = por %p183, %p184
      %p186 = scmp.ne.s32.totalorder %s175, %s178
      %p187 = scmp.eq.s32.totalorder %s18, 4
      %p188 = por %p186, %p187
      %p189 = scmp.ne.s32.totalorder %s178, %s179
      %p190 = scmp.eq.s32.totalorder %s18, 0
      %p191 = por %p189, %p190
      %p192 = scmp.ne.s32.totalorder %s178, %s179
      %p193 = scmp.eq.s32.totalorder %s19, 4
      %p194 = por %p192, %p193
      %p196 = scmp.ne.s32.totalorder %s179, %s195
      %p197 = scmp.eq.s32.totalorder %s19, 0
      %p198 = por %p196, %p197
      %p199 = scmp.le.s32.totalorder 1, %s13
      %p200 = scmp.lt.s32.totalorder %s13, 6
      %p201 = pnand %p199, %p200
      %p202 = pneg %p201
      // Predicated region
      $region9: #{prediction_model_forward.1} parent=5 // pred_check
        _
      $region10: #{prediction_model_forward.1} parent=5 // pred_check_branch
        %204 = sbr.rel (%p201) target = $region12
      $region11: #{prediction_model_forward.1} parent=5 // pred_region
        %s205 = ssub.s32 %s13, 1
        // Predicated region
        $region13: #{prediction_model_forward.1} parent=11 // pred_check
          %p206 = pneg %p60
        $region14: #{prediction_model_forward.1} parent=11 // pred_check_branch
          %208 = sbr.rel (%p206) target = $region16
        $region15: #{prediction_model_forward.1} parent=11 // pred_region
          _
        $region16: #{prediction_model_forward.1} parent=11 // pred_fallthru
          _
        // Predicated region
        $region17: #{prediction_model_forward.1} parent=11 // pred_check
          %p209 = pneg %p81
        $region18: #{prediction_model_forward.1} parent=11 // pred_check_branch
          %211 = sbr.rel (%p209) target = $region20
        $region19: #{prediction_model_forward.1} parent=11 // pred_region
          _
        $region20: #{prediction_model_forward.1} parent=11 // pred_fallthru
          _
        // Predicated region
        $region21: #{prediction_model_forward.1} parent=11 // pred_check
          %p212 = pneg %p102
        $region22: #{prediction_model_forward.1} parent=11 // pred_check_branch
          %214 = sbr.rel (%p212) target = $region24
        $region23: #{prediction_model_forward.1} parent=11 // pred_region
          _
        $region24: #{prediction_model_forward.1} parent=11 // pred_fallthru
          _
        // Predicated region
        $region25: #{prediction_model_forward.1} parent=11 // pred_check
          %p215 = pneg %p123
        $region26: #{prediction_model_forward.1} parent=11 // pred_check_branch
          %217 = sbr.rel (%p215) target = $region28
        $region27: #{prediction_model_forward.1} parent=11 // pred_region
          _
        $region28: #{prediction_model_forward.1} parent=11 // pred_fallthru
          _
        // Predicated region
        $region29: #{prediction_model_forward.1} parent=11 // pred_check
          %p218 = pneg %p144
        $region30: #{prediction_model_forward.1} parent=11 // pred_check_branch
          %220 = sbr.rel (%p218) target = $region32
        $region31: #{prediction_model_forward.1} parent=11 // pred_region
          _
        $region32: #{prediction_model_forward.1} parent=11 // pred_fallthru
          _
        // Predicated region
        $region33: #{prediction_model_forward.1} parent=11 // pred_check
          %p221 = pneg %p165
        $region34: #{prediction_model_forward.1} parent=11 // pred_check_branch
          %223 = sbr.rel (%p221) target = $region36
        $region35: #{prediction_model_forward.1} parent=11 // pred_region
          _
        $region36: #{prediction_model_forward.1} parent=11 // pred_fallthru
          _
      $region12: #{prediction_model_forward.1} parent=5 // pred_fallthru
        _
      %p224 = scmp.lt.s32.totalorder %s13, 5
      // Predicated region
      $region37: #{prediction_model_forward.1} parent=5 // pred_check
        %p225 = pneg %p224
      $region38: #{prediction_model_forward.1} parent=5 // pred_check_branch
        %227 = sbr.rel (%p225) target = $region40
      $region39: #{prediction_model_forward.1} parent=5 // pred_region
        // Predicated region
        $region41: #{prediction_model_forward.1} parent=39 // pred_check
          %p228 = pneg %p33
        $region42: #{prediction_model_forward.1} parent=39 // pred_check_branch
          %230 = sbr.rel (%p228) target = $region44
        $region43: #{prediction_model_forward.1} parent=39 // pred_region
          %s231 = smul.u32 16, %s13
          %s232 = ssub.s32 65, %s231
          %p233 = scmp.lt.s32.totalorder %s232, 16
          %s234 = scalar_select %p233, %s232, 16
          %s235 = smul.u32 128, %s234
          %s236 = smul.u32 %s235, 2
          %p237 = scmp.lt.s32.totalorder %s231, 64
          %s238 = scalar_select %p237, %s231, 64
          %s239 = smul.addr %s238, 2
          %s240 = smul.addr %s239, 8
          %s241 = scalar_lea.vmem %s0, %s240
          %s242 = smul.u32 16, %s13
          %s243 = ssub.s32 65, %s242
          %p244 = scmp.lt.s32.totalorder %s243, 16
          %s245 = scalar_select %p244, %s243, 16
          %s246 = smul.u32 128, %s245
          %s247 = smul.u32 %s246, 2
        $region44: #{prediction_model_forward.1} parent=39 // pred_fallthru
          _
      $region40: #{prediction_model_forward.1} parent=5 // pred_fallthru
        _
      %p248 = scmp.le.s32.totalorder 1, %s13
      %p249 = scmp.lt.s32.totalorder %s13, 6
      %p250 = pnand %p248, %p249
      %p251 = pneg %p250
      // Predicated region
      $region45: #{prediction_model_forward.1} parent=5 // pred_check
        _
      $region46: #{prediction_model_forward.1} parent=5 // pred_check_branch
        %253 = sbr.rel (%p250) target = $region48
      $region47: #{prediction_model_forward.1} parent=5 // pred_region
        %s254 = ssub.s32 %s13, 1
        %s255 = smul.u32 16, %s18
        %s256 = ssub.s32 65, %s255
        %p257 = scmp.lt.s32.totalorder %s256, 16
        %s258 = scalar_select %p257, %s256, 16
        %s259 = smul.u32 128, %s258
        %s260 = smul.u32 %s259, 2
        %p261 = scmp.lt.s32.totalorder %s255, 64
        %s262 = scalar_select %p261, %s255, 64
        %s263 = smul.addr %s262, 2
        %s264 = smul.addr %s263, 8
        %s265 = scalar_lea.vmem %s0, %s264
        %p266 = pneg %p39
        %p267 = pneg %p36
        %p268 = pneg %p60
        %p269 = pneg %p57
        %p270 = pneg %p81
        %p271 = pneg %p78
        %p272 = pneg %p102
        %p273 = pneg %p99
        %p274 = pneg %p123
        %p275 = pneg %p120
        %p276 = pneg %p144
        %p277 = pneg %p141
        %p278 = pneg %p165
        %p279 = pneg %p162
        %p280 = pneg %p191
        %p281 = pneg %p188
        %s282 = sand.u32 %s178, 1
        %s283 = sand.u32 %s178, 1
        %s284 = smul.addr %s283, 128
        %s285 = scalar_lea.vmem [#allocation2], %s284
        %s286 = smul.u32 16, %s18
        %s287 = ssub.s32 65, %s286
        %p288 = scmp.lt.s32.totalorder %s287, 16
        %s289 = scalar_select %p288, %s287, 16
        %s290 = smul.u32 128, %s289
        %s291 = smul.u32 %s290, 2
        %p292 = scmp.lt.s32.totalorder %s286, 64
        %s293 = scalar_select %p292, %s286, 64
        %s294 = smul.addr %s293, 2
        %s295 = smul.addr %s294, 8
        %s296 = scalar_lea.vmem %s0, %s295
        %s297 = smul.u32 16, %s18
        %s298 = ssub.s32 65, %s297
        %p299 = scmp.lt.s32.totalorder %s298, 16
        %s300 = scalar_select %p299, %s298, 16
        %s301 = smul.u32 128, %s300
        %s302 = smul.u32 %s301, 2
        %s303 = smul.u32 16, %s18
        %s304 = ssub.s32 65, %s303
        %p305 = scmp.lt.s32.totalorder %s304, 16
        %s306 = scalar_select %p305, %s304, 16
        %s307 = smul.u32 128, %s306
        %v309 = vld [vmem:[%s1] sm:$0xf]
        %v310 = vld [vmem:[%s1 + $0x4] sm:$0xf]
        %v311 = vld [vmem:[%s1 + $0x8] sm:$0xf]
        %v312 = vld [vmem:[%s1 + $0xc] sm:$0xf]
        %v313 = vld [vmem:[%s1 + $0x10] sm:$0xf]
        %v314 = vld [vmem:[%s1 + $0x14] sm:$0xf]
        %v315 = vld [vmem:[%s1 + $0x18] sm:$0xf]
        %v316 = vld [vmem:[%s1 + $0x1c] sm:$0xf]
        %v317 = vld [vmem:[%s1 + $0x20] sm:$0xf]
        %v318 = vld [vmem:[%s1 + $0x24] sm:$0xf]
        %v319 = vld [vmem:[%s1 + $0x28] sm:$0xf]
        %v320 = vld [vmem:[%s1 + $0x2c] sm:$0xf]
        %v321 = vld [vmem:[%s1 + $0x30] sm:$0xf]
        %v322 = vld [vmem:[%s1 + $0x34] sm:$0xf]
        %v323 = vld [vmem:[%s1 + $0x38] sm:$0xf]
        %v324 = vld [vmem:[%s1 + $0x3c] sm:$0xf]
        %v325 = vld [vmem:[%s1 + $0x40] sm:$0xf]
        %v326 = vld [vmem:[%s1 + $0x44] sm:$0xf]
        %v327 = vld [vmem:[%s1 + $0x48] sm:$0xf]
        %v328 = vld [vmem:[%s1 + $0x4c] sm:$0xf]
        %v329 = vld [vmem:[%s1 + $0x50] sm:$0xf]
        %v330 = vld [vmem:[%s1 + $0x54] sm:$0xf]
        %v331 = vld [vmem:[%s1 + $0x58] sm:$0xf]
        %v332 = vld [vmem:[%s1 + $0x5c] sm:$0xf]
        %v333 = vld [vmem:[%s1 + $0x60] sm:$0xf]
        %v334 = vld [vmem:[%s1 + $0x64] sm:$0xf]
        %v335 = vld [vmem:[%s1 + $0x68] sm:$0xf]
        %v336 = vld [vmem:[%s1 + $0x6c] sm:$0xf]
        %v337 = vld [vmem:[%s1 + $0x70] sm:$0xf]
        %v338 = vld [vmem:[%s1 + $0x74] sm:$0xf]
        %v339 = vld [vmem:[%s1 + $0x78] sm:$0xf]
        %v340 = vld [vmem:[%s1 + $0x7c] sm:$0xf]
        %v341 = vld [vmem:[%s3] sm:$0xf]
        %v342 = vld [vmem:[%s3 + $0x4] sm:$0xf]
        %v343 = vld [vmem:[%s3 + $0x8] sm:$0xf]
        %v344 = vld [vmem:[%s3 + $0xc] sm:$0xf]
        %v345 = vld [vmem:[%s3 + $0x10] sm:$0xf]
        %v346 = vld [vmem:[%s3 + $0x14] sm:$0xf]
        %v347 = vld [vmem:[%s3 + $0x18] sm:$0xf]
        %v348 = vld [vmem:[%s3 + $0x1c] sm:$0xf]
        %v349 = vld [vmem:[%s3 + $0x20] sm:$0xf]
        %v350 = vld [vmem:[%s3 + $0x24] sm:$0xf]
        %v351 = vld [vmem:[%s3 + $0x28] sm:$0xf]
        %v352 = vld [vmem:[%s3 + $0x2c] sm:$0xf]
        %v353 = vld [vmem:[%s3 + $0x30] sm:$0xf]
        %v354 = vld [vmem:[%s3 + $0x34] sm:$0xf]
        %v355 = vld [vmem:[%s3 + $0x38] sm:$0xf]
        %v356 = vld [vmem:[%s3 + $0x3c] sm:$0xf]
        %v357 = vld [vmem:[%s5] sm:$0xf]
        %v358 = vld [vmem:[%s5 + $0x4] sm:$0xf]
        %v359 = vld [vmem:[%s5 + $0x8] sm:$0xf]
        %v360 = vld [vmem:[%s5 + $0xc] sm:$0xf]
        %v361 = vld [vmem:[%s5 + $0x10] sm:$0xf]
        %v362 = vld [vmem:[%s5 + $0x14] sm:$0xf]
        %v363 = vld [vmem:[%s5 + $0x18] sm:$0xf]
        %v364 = vld [vmem:[%s5 + $0x1c] sm:$0xf]
        %v365 = vld [vmem:[%s2] sm:$0x1]
        %v366 = vld [vmem:[%s4] sm:$0x1]
        %v367 = vld [vmem:[%s6] sm:$0x1]
        %s368 = smul.u32 0, 2
        %s369 = smul.addr %s368, 8
        %s370 = scalar_lea.vmem %s296, %s369
        %v371 = vld [vmem:[%s370] sm:$0xff]
        %v372 = vld [vmem:[%s370 + $0x8] sm:$0xff]
        %v373 = vld [vmem:[%s370 + $0x10] sm:$0xff]
        %v374 = vld [vmem:[%s370 + $0x18] sm:$0xff]
        %v375 = vld [vmem:[%s370 + $0x20] sm:$0xff]
        %v376 = vld [vmem:[%s370 + $0x28] sm:$0xff]
        %v377 = vld [vmem:[%s370 + $0x30] sm:$0xff]
        %v378 = vld [vmem:[%s370 + $0x38] sm:$0xff]
        %v379 = vld [vmem:[%s370 + $0x40] sm:$0xff]
        %v380 = vld [vmem:[%s370 + $0x48] sm:$0xff]
        %v381 = vld [vmem:[%s370 + $0x50] sm:$0xff]
        %v382 = vld [vmem:[%s370 + $0x58] sm:$0xff]
        %v383 = vld [vmem:[%s370 + $0x60] sm:$0xff]
        %v384 = vld [vmem:[%s370 + $0x68] sm:$0xff]
        %v385 = vld [vmem:[%s370 + $0x70] sm:$0xff]
        %v386 = vld [vmem:[%s370 + $0x78] sm:$0xff]
        %v387 = vld [vmem:[%s370 + $0x80] sm:$0xff]
        %v388 = vld [vmem:[%s370 + $0x88] sm:$0xff]
        %v389 = vld [vmem:[%s370 + $0x90] sm:$0xff]
        %v390 = vld [vmem:[%s370 + $0x98] sm:$0xff]
        %v391 = vld [vmem:[%s370 + $0xa0] sm:$0xff]
        %v392 = vld [vmem:[%s370 + $0xa8] sm:$0xff]
        %v393 = vld [vmem:[%s370 + $0xb0] sm:$0xff]
        %v394 = vld [vmem:[%s370 + $0xb8] sm:$0xff]
        %v395 = vld [vmem:[%s370 + $0xc0] sm:$0xff]
        %v396 = vld [vmem:[%s370 + $0xc8] sm:$0xff]
        %v397 = vld [vmem:[%s370 + $0xd0] sm:$0xff]
        %v398 = vld [vmem:[%s370 + $0xd8] sm:$0xff]
        %v399 = vld [vmem:[%s370 + $0xe0] sm:$0xff]
        %v400 = vld [vmem:[%s370 + $0xe8] sm:$0xff]
        %v401 = vld [vmem:[%s370 + $0xf0] sm:$0xff]
        %v402 = vld [vmem:[%s370 + $0xf8] sm:$0xff]
        %v403 = vpack.c.bf16 %v373, %v371
        %v404 = vpack.c.bf16 %v374, %v372
        %v405 = vpack.c.bf16 %v377, %v375
        %v406 = vpack.c.bf16 %v378, %v376
        %v407 = vpack.c.bf16 %v381, %v379
        %v408 = vpack.c.bf16 %v382, %v380
        %v409 = vpack.c.bf16 %v385, %v383
        %v410 = vpack.c.bf16 %v386, %v384
        %v411 = vpack.c.bf16 %v389, %v387
        %v412 = vpack.c.bf16 %v390, %v388
        %v413 = vpack.c.bf16 %v393, %v391
        %v414 = vpack.c.bf16 %v394, %v392
        %v415 = vpack.c.bf16 %v397, %v395
        %v416 = vpack.c.bf16 %v398, %v396
        %v417 = vpack.c.bf16 %v401, %v399
        %v418 = vpack.c.bf16 %v402, %v400
        %v420 = vlaneseq
        %v421 = vshrl.u32 %v420, 7
        %v422 = vsub.s32 0, %v421
        %v423 = vrot.slane %v365, %v422
        %v457 = vunpack.c.l.b16 %v309
        %v458 = vunpack.c.l.b16 %v310
        %v459 = vunpack.c.l.b16 %v311
        %v460 = vunpack.c.l.b16 %v312
        %v461 = vunpack.c.l.b16 %v313
        %v462 = vunpack.c.l.b16 %v314
        %v463 = vunpack.c.l.b16 %v315
        %v464 = vunpack.c.l.b16 %v316
        %v465 = vunpack.c.l.b16 %v317
        %v466 = vunpack.c.l.b16 %v318
        %v467 = vunpack.c.l.b16 %v319
        %v468 = vunpack.c.l.b16 %v320
        %v469 = vunpack.c.l.b16 %v321
        %v470 = vunpack.c.l.b16 %v322
        %v471 = vunpack.c.l.b16 %v323
        %v472 = vunpack.c.l.b16 %v324
        %v473 = vunpack.c.l.b16 %v325
        %v474 = vunpack.c.l.b16 %v326
        %v475 = vunpack.c.l.b16 %v327
        %v476 = vunpack.c.l.b16 %v328
        %v477 = vunpack.c.l.b16 %v329
        %v478 = vunpack.c.l.b16 %v330
        %v479 = vunpack.c.l.b16 %v331
        %v480 = vunpack.c.l.b16 %v332
        %v481 = vunpack.c.l.b16 %v333
        %v482 = vunpack.c.l.b16 %v334
        %v483 = vunpack.c.l.b16 %v335
        %v484 = vunpack.c.l.b16 %v336
        %v485 = vunpack.c.l.b16 %v337
        %v486 = vunpack.c.l.b16 %v338
        %v487 = vunpack.c.l.b16 %v339
        %v488 = vunpack.c.l.b16 %v340
        %v489 = vpack.c.b16 %v458, %v457
        %v490 = vpack.c.b16 %v460, %v459
        %v491 = vpack.c.b16 %v462, %v461
        %v492 = vpack.c.b16 %v464, %v463
        %v493 = vpack.c.b16 %v466, %v465
        %v494 = vpack.c.b16 %v468, %v467
        %v495 = vpack.c.b16 %v470, %v469
        %v496 = vpack.c.b16 %v472, %v471
        %v497 = vpack.c.b16 %v474, %v473
        %v498 = vpack.c.b16 %v476, %v475
        %v499 = vpack.c.b16 %v478, %v477
        %v500 = vpack.c.b16 %v480, %v479
        %v501 = vpack.c.b16 %v482, %v481
        %v502 = vpack.c.b16 %v484, %v483
        %v503 = vpack.c.b16 %v486, %v485
        %v504 = vpack.c.b16 %v488, %v487
        %521 = vmatprep.subr.bf16.mxu0 0
        %522 = vmatpush1.bf16.msra.mxu0 %v496
        %523 = vmatprep.subr.bf16.mxu0 0
        %524 = vmatpush1.bf16.msra.mxu0 %v495
        %525 = vmatprep.subr.bf16.mxu0 0
        %526 = vmatpush1.bf16.msra.mxu0 %v494
        %527 = vmatprep.subr.bf16.mxu0 0
        %528 = vmatpush1.bf16.msra.mxu0 %v493
        %529 = vmatprep.subr.bf16.mxu0 0
        %530 = vmatpush1.bf16.msra.mxu0 %v492
        %531 = vmatprep.subr.bf16.mxu0 0
        %532 = vmatpush1.bf16.msra.mxu0 %v491
        %533 = vmatprep.subr.bf16.mxu0 0
        %534 = vmatpush1.bf16.msra.mxu0 %v490
        %535 = vmatprep.subr.bf16.mxu0 0
        %536 = vmatpush1.bf16.msra.mxu0 %v489
        %537 = vmatprep.subr.bf16.mxu0 0
        %538 = vmatpush2.bf16.msra.mxu0 %v504
        %539 = vmatprep.subr.bf16.mxu0 0
        %540 = vmatpush2.bf16.msra.mxu0 %v503
        %541 = vmatprep.subr.bf16.mxu0 0
        %542 = vmatpush2.bf16.msra.mxu0 %v502
        %543 = vmatprep.subr.bf16.mxu0 0
        %544 = vmatpush2.bf16.msra.mxu0 %v501
        %545 = vmatprep.subr.bf16.mxu0 0
        %546 = vmatpush2.bf16.msra.mxu0 %v500
        %547 = vmatprep.subr.bf16.mxu0 0
        %548 = vmatpush2.bf16.msra.mxu0 %v499
        %549 = vmatprep.subr.bf16.mxu0 0
        %550 = vmatpush2.bf16.msra.mxu0 %v498
        %551 = vmatprep.subr.bf16.mxu0 0
        %552 = vmatpush2.bf16.msra.mxu0 %v497
        %553 = vmatprep.mubr.bf16.mxu0 %v404
        %554 = vmatmul.mubr.bf16.gmra.mxu0 %v403
        %v555 = vpop.f32.mrf.mxu0
        %v556 = vadd.f32 %v423, %v555
        %v557 = vpop.f32.mrf.mxu0
        %v558 = vpop.f32.mrf.mxu0
        %v559 = vadd.f32 %v423, %v558
        %v560 = vpop.f32.mrf.mxu0
        %561 = vmatprep.mubr.bf16.mxu0 %v406
        %562 = vmatmul.mubr.bf16.gmra.mxu0 %v405
        %v563 = vpop.f32.mrf.mxu0
        %v564 = vadd.f32 %v423, %v563
        %v565 = vpop.f32.mrf.mxu0
        %v566 = vpop.f32.mrf.mxu0
        %v567 = vadd.f32 %v423, %v566
        %v568 = vpop.f32.mrf.mxu0
        %569 = vmatprep.mubr.bf16.mxu0 %v408
        %570 = vmatmul.mubr.bf16.gmra.mxu0 %v407
        %v571 = vpop.f32.mrf.mxu0
        %v572 = vadd.f32 %v423, %v571
        %v573 = vpop.f32.mrf.mxu0
        %v574 = vpop.f32.mrf.mxu0
        %v575 = vadd.f32 %v423, %v574
        %v576 = vpop.f32.mrf.mxu0
        %577 = vmatprep.mubr.bf16.mxu0 %v410
        %578 = vmatmul.mubr.bf16.gmra.mxu0 %v409
        %v579 = vpop.f32.mrf.mxu0
        %v580 = vadd.f32 %v423, %v579
        %v581 = vpop.f32.mrf.mxu0
        %v582 = vpop.f32.mrf.mxu0
        %v583 = vadd.f32 %v423, %v582
        %v584 = vpop.f32.mrf.mxu0
        %585 = vmatprep.mubr.bf16.mxu0 %v412
        %586 = vmatmul.mubr.bf16.gmra.mxu0 %v411
        %v587 = vpop.f32.mrf.mxu0
        %v588 = vadd.f32 %v423, %v587
        %v589 = vpop.f32.mrf.mxu0
        %v590 = vpop.f32.mrf.mxu0
        %v591 = vadd.f32 %v423, %v590
        %v592 = vpop.f32.mrf.mxu0
        %593 = vmatprep.mubr.bf16.mxu0 %v414
        %594 = vmatmul.mubr.bf16.gmra.mxu0 %v413
        %v595 = vpop.f32.mrf.mxu0
        %v596 = vadd.f32 %v423, %v595
        %v597 = vpop.f32.mrf.mxu0
        %v598 = vpop.f32.mrf.mxu0
        %v599 = vadd.f32 %v423, %v598
        %v600 = vpop.f32.mrf.mxu0
        %601 = vmatprep.mubr.bf16.mxu0 %v416
        %602 = vmatmul.mubr.bf16.gmra.mxu0 %v415
        %v603 = vpop.f32.mrf.mxu0
        %v604 = vadd.f32 %v423, %v603
        %v605 = vpop.f32.mrf.mxu0
        %v606 = vpop.f32.mrf.mxu0
        %v607 = vadd.f32 %v423, %v606
        %v608 = vpop.f32.mrf.mxu0
        %609 = vmatprep.mubr.bf16.mxu0 %v418
        %610 = vmatmul.mubr.bf16.gmra.mxu0 %v417
        %v611 = vpop.f32.mrf.mxu0
        %v612 = vadd.f32 %v423, %v611
        %v613 = vpop.f32.mrf.mxu0
        %v614 = vpop.f32.mrf.mxu0
        %v615 = vadd.f32 %v423, %v614
        %v616 = vpop.f32.mrf.mxu0
        %617 = vdwg.mxu0
        %v618 = vtanh.pop %v556
        %v619 = vtanh.pop %v559
        %v620 = vtanh.pop %v564
        %v621 = vtanh.pop %v567
        %v622 = vtanh.pop %v572
        %v623 = vtanh.pop %v575
        %v624 = vtanh.pop %v580
        %v625 = vtanh.pop %v583
        %v626 = vtanh.pop %v588
        %v627 = vtanh.pop %v591
        %v628 = vtanh.pop %v596
        %v629 = vtanh.pop %v599
        %v630 = vtanh.pop %v604
        %v631 = vtanh.pop %v607
        %v632 = vtanh.pop %v612
        %v633 = vtanh.pop %v615
        %v634 = vpack.c.bf16 %v619, %v618
        %v635 = vpack.c.bf16 %v621, %v620
        %v636 = vpack.c.bf16 %v623, %v622
        %v637 = vpack.c.bf16 %v625, %v624
        %v638 = vpack.c.bf16 %v627, %v626
        %v639 = vpack.c.bf16 %v629, %v628
        %v640 = vpack.c.bf16 %v631, %v630
        %v641 = vpack.c.bf16 %v633, %v632
        %v643 = vlaneseq
        %v644 = vshrl.u32 %v643, 7
        %v645 = vsub.s32 0, %v644
        %v646 = vrot.slane %v366, %v645
        %v664 = vunpack.c.l.b16 %v341
        %v665 = vunpack.c.l.b16 %v342
        %v666 = vunpack.c.l.b16 %v343
        %v667 = vunpack.c.l.b16 %v344
        %v668 = vunpack.c.l.b16 %v345
        %v669 = vunpack.c.l.b16 %v346
        %v670 = vunpack.c.l.b16 %v347
        %v671 = vunpack.c.l.b16 %v348
        %v672 = vunpack.c.l.b16 %v349
        %v673 = vunpack.c.l.b16 %v350
        %v674 = vunpack.c.l.b16 %v351
        %v675 = vunpack.c.l.b16 %v352
        %v676 = vunpack.c.l.b16 %v353
        %v677 = vunpack.c.l.b16 %v354
        %v678 = vunpack.c.l.b16 %v355
        %v679 = vunpack.c.l.b16 %v356
        %v680 = vpack.c.b16 %v665, %v664
        %v681 = vpack.c.b16 %v667, %v666
        %v682 = vpack.c.b16 %v669, %v668
        %v683 = vpack.c.b16 %v671, %v670
        %v684 = vpack.c.b16 %v673, %v672
        %v685 = vpack.c.b16 %v675, %v674
        %v686 = vpack.c.b16 %v677, %v676
        %v687 = vpack.c.b16 %v679, %v678
        %696 = vmatprep.subr.bf16.mxu0 0
        %697 = vmatpush1.bf16.msra.mxu0 %v687
        %698 = vmatprep.subr.bf16.mxu0 0
        %699 = vmatpush1.bf16.msra.mxu0 %v686
        %700 = vmatprep.subr.bf16.mxu0 0
        %701 = vmatpush1.bf16.msra.mxu0 %v685
        %702 = vmatprep.subr.bf16.mxu0 0
        %703 = vmatpush1.bf16.msra.mxu0 %v684
        %704 = vmatprep.subr.bf16.mxu0 0
        %705 = vmatpush1.bf16.msra.mxu0 %v683
        %706 = vmatprep.subr.bf16.mxu0 0
        %707 = vmatpush1.bf16.msra.mxu0 %v682
        %708 = vmatprep.subr.bf16.mxu0 0
        %709 = vmatpush1.bf16.msra.mxu0 %v681
        %710 = vmatprep.subr.bf16.mxu0 0
        %711 = vmatpush1.bf16.msra.mxu0 %v680
        %712 = vmatprep.subr.bf16.mxu0 0
        %713 = vmatpush2.bf16.msra.mxu0 0
        %714 = vmatprep.subr.bf16.mxu0 0
        %715 = vmatpush2.bf16.msra.mxu0 0
        %716 = vmatprep.subr.bf16.mxu0 0
        %717 = vmatpush2.bf16.msra.mxu0 0
        %718 = vmatprep.subr.bf16.mxu0 0
        %719 = vmatpush2.bf16.msra.mxu0 0
        %720 = vmatprep.subr.bf16.mxu0 0
        %721 = vmatpush2.bf16.msra.mxu0 0
        %722 = vmatprep.subr.bf16.mxu0 0
        %723 = vmatpush2.bf16.msra.mxu0 0
        %724 = vmatprep.subr.bf16.mxu0 0
        %725 = vmatpush2.bf16.msra.mxu0 0
        %726 = vmatprep.subr.bf16.mxu0 0
        %727 = vmatpush2.bf16.msra.mxu0 0
        %728 = vmatprep.mubr.bf16.mxu0 0
        %729 = vmatmul.mubr.bf16.gmra.mxu0 %v634
        %v730 = vpop.f32.mrf.mxu0
        %v731 = vadd.f32 %v646, %v730
        %v732 = vpop.f32.mrf.mxu0
        %v733 = vpop.f32.mrf.mxu0
        %v734 = vadd.f32 %v646, %v733
        %v735 = vpop.f32.mrf.mxu0
        %736 = vmatprep.mubr.bf16.mxu0 0
        %737 = vmatmul.mubr.bf16.gmra.mxu0 %v635
        %v738 = vpop.f32.mrf.mxu0
        %v739 = vadd.f32 %v646, %v738
        %v740 = vpop.f32.mrf.mxu0
        %v741 = vpop.f32.mrf.mxu0
        %v742 = vadd.f32 %v646, %v741
        %v743 = vpop.f32.mrf.mxu0
        %744 = vmatprep.mubr.bf16.mxu0 0
        %745 = vmatmul.mubr.bf16.gmra.mxu0 %v636
        %v746 = vpop.f32.mrf.mxu0
        %v747 = vadd.f32 %v646, %v746
        %v748 = vpop.f32.mrf.mxu0
        %v749 = vpop.f32.mrf.mxu0
        %v750 = vadd.f32 %v646, %v749
        %v751 = vpop.f32.mrf.mxu0
        %752 = vmatprep.mubr.bf16.mxu0 0
        %753 = vmatmul.mubr.bf16.gmra.mxu0 %v637
        %v754 = vpop.f32.mrf.mxu0
        %v755 = vadd.f32 %v646, %v754
        %v756 = vpop.f32.mrf.mxu0
        %v757 = vpop.f32.mrf.mxu0
        %v758 = vadd.f32 %v646, %v757
        %v759 = vpop.f32.mrf.mxu0
        %760 = vmatprep.mubr.bf16.mxu0 0
        %761 = vmatmul.mubr.bf16.gmra.mxu0 %v638
        %v762 = vpop.f32.mrf.mxu0
        %v763 = vadd.f32 %v646, %v762
        %v764 = vpop.f32.mrf.mxu0
        %v765 = vpop.f32.mrf.mxu0
        %v766 = vadd.f32 %v646, %v765
        %v767 = vpop.f32.mrf.mxu0
        %768 = vmatprep.mubr.bf16.mxu0 0
        %769 = vmatmul.mubr.bf16.gmra.mxu0 %v639
        %v770 = vpop.f32.mrf.mxu0
        %v771 = vadd.f32 %v646, %v770
        %v772 = vpop.f32.mrf.mxu0
        %v773 = vpop.f32.mrf.mxu0
        %v774 = vadd.f32 %v646, %v773
        %v775 = vpop.f32.mrf.mxu0
        %776 = vmatprep.mubr.bf16.mxu0 0
        %777 = vmatmul.mubr.bf16.gmra.mxu0 %v640
        %v778 = vpop.f32.mrf.mxu0
        %v779 = vadd.f32 %v646, %v778
        %v780 = vpop.f32.mrf.mxu0
        %v781 = vpop.f32.mrf.mxu0
        %v782 = vadd.f32 %v646, %v781
        %v783 = vpop.f32.mrf.mxu0
        %784 = vmatprep.mubr.bf16.mxu0 0
        %785 = vmatmul.mubr.bf16.gmra.mxu0 %v641
        %v786 = vpop.f32.mrf.mxu0
        %v787 = vadd.f32 %v646, %v786
        %v788 = vpop.f32.mrf.mxu0
        %v789 = vpop.f32.mrf.mxu0
        %v790 = vadd.f32 %v646, %v789
        %v791 = vpop.f32.mrf.mxu0
        %792 = vdwg.mxu0
        %v793 = vtanh.pop %v731
        %v794 = vtanh.pop %v734
        %v795 = vtanh.pop %v739
        %v796 = vtanh.pop %v742
        %v797 = vtanh.pop %v747
        %v798 = vtanh.pop %v750
        %v799 = vtanh.pop %v755
        %v800 = vtanh.pop %v758
        %v801 = vtanh.pop %v763
        %v802 = vtanh.pop %v766
        %v803 = vtanh.pop %v771
        %v804 = vtanh.pop %v774
        %v805 = vtanh.pop %v779
        %v806 = vtanh.pop %v782
        %v807 = vtanh.pop %v787
        %v808 = vtanh.pop %v790
        %v809 = vpack.c.bf16 %v794, %v793
        %v810 = vpack.c.bf16 %v796, %v795
        %v811 = vpack.c.bf16 %v798, %v797
        %v812 = vpack.c.bf16 %v800, %v799
        %v813 = vpack.c.bf16 %v802, %v801
        %v814 = vpack.c.bf16 %v804, %v803
        %v815 = vpack.c.bf16 %v806, %v805
        %v816 = vpack.c.bf16 %v808, %v807
        %v818 = vlaneseq
        %v819 = vshrl.u32 %v818, 7
        %v820 = vsub.s32 0, %v819
        %v821 = vrot.slane %v367, %v820
        %v831 = vunpack.c.l.b16 %v357
        %v832 = vunpack.c.l.b16 %v358
        %v833 = vunpack.c.l.b16 %v359
        %v834 = vunpack.c.l.b16 %v360
        %v835 = vunpack.c.l.b16 %v361
        %v836 = vunpack.c.l.b16 %v362
        %v837 = vunpack.c.l.b16 %v363
        %v838 = vunpack.c.l.b16 %v364
        %v839 = vpack.c.b16 %v832, %v831
        %v840 = vpack.c.b16 %v834, %v833
        %v841 = vpack.c.b16 %v836, %v835
        %v842 = vpack.c.b16 %v838, %v837
        %vm847 = vcmask 523264
        %v849 = vsel %vm847, %v809, 0
        %v852 = vsel %vm847, %v810, 0
        %v855 = vsel %vm847, %v811, 0
        %v858 = vsel %vm847, %v812, 0
        %v861 = vsel %vm847, %v813, 0
        %v864 = vsel %vm847, %v814, 0
        %v867 = vsel %vm847, %v815, 0
        %v870 = vsel %vm847, %v816, 0
        %872 = vmatprep.subr.bf16.mxu0 0
        %873 = vmatpush1.bf16.msra.mxu0 0
        %874 = vmatprep.subr.bf16.mxu0 0
        %875 = vmatpush1.bf16.msra.mxu0 0
        %876 = vmatprep.subr.bf16.mxu0 0
        %877 = vmatpush1.bf16.msra.mxu0 0
        %878 = vmatprep.subr.bf16.mxu0 0
        %879 = vmatpush1.bf16.msra.mxu0 0
        %880 = vmatprep.subr.bf16.mxu0 0
        %881 = vmatpush1.bf16.msra.mxu0 %v842
        %882 = vmatprep.subr.bf16.mxu0 0
        %883 = vmatpush1.bf16.msra.mxu0 %v841
        %884 = vmatprep.subr.bf16.mxu0 0
        %885 = vmatpush1.bf16.msra.mxu0 %v840
        %886 = vmatprep.subr.bf16.mxu0 0
        %887 = vmatpush1.bf16.msra.mxu0 %v839
        %888 = vmatprep.subr.bf16.mxu0 0
        %889 = vmatpush2.bf16.msra.mxu0 0
        %890 = vmatprep.subr.bf16.mxu0 0
        %891 = vmatpush2.bf16.msra.mxu0 0
        %892 = vmatprep.subr.bf16.mxu0 0
        %893 = vmatpush2.bf16.msra.mxu0 0
        %894 = vmatprep.subr.bf16.mxu0 0
        %895 = vmatpush2.bf16.msra.mxu0 0
        %896 = vmatprep.subr.bf16.mxu0 0
        %897 = vmatpush2.bf16.msra.mxu0 0
        %898 = vmatprep.subr.bf16.mxu0 0
        %899 = vmatpush2.bf16.msra.mxu0 0
        %900 = vmatprep.subr.bf16.mxu0 0
        %901 = vmatpush2.bf16.msra.mxu0 0
        %902 = vmatprep.subr.bf16.mxu0 0
        %903 = vmatpush2.bf16.msra.mxu0 0
        %904 = vmatprep.mubr.bf16.mxu0 0
        %905 = vmatmul.mubr.bf16.gmra.mxu0 %v849
        %v906 = vpop.f32.mrf.mxu0
        %v907 = vadd.f32 %v821, %v906
        %v908 = vpop.f32.mrf.mxu0
        %v909 = vpop.f32.mrf.mxu0
        %v910 = vadd.f32 %v821, %v909
        %v911 = vpop.f32.mrf.mxu0
        %912 = vmatprep.mubr.bf16.mxu0 0
        %913 = vmatmul.mubr.bf16.gmra.mxu0 %v852
        %v914 = vpop.f32.mrf.mxu0
        %v915 = vadd.f32 %v821, %v914
        %v916 = vpop.f32.mrf.mxu0
        %v917 = vpop.f32.mrf.mxu0
        %v918 = vadd.f32 %v821, %v917
        %v919 = vpop.f32.mrf.mxu0
        %920 = vmatprep.mubr.bf16.mxu0 0
        %921 = vmatmul.mubr.bf16.gmra.mxu0 %v855
        %v922 = vpop.f32.mrf.mxu0
        %v923 = vadd.f32 %v821, %v922
        %v924 = vpop.f32.mrf.mxu0
        %v925 = vpop.f32.mrf.mxu0
        %v926 = vadd.f32 %v821, %v925
        %v927 = vpop.f32.mrf.mxu0
        %928 = vmatprep.mubr.bf16.mxu0 0
        %929 = vmatmul.mubr.bf16.gmra.mxu0 %v858
        %v930 = vpop.f32.mrf.mxu0
        %v931 = vadd.f32 %v821, %v930
        %v932 = vpop.f32.mrf.mxu0
        %v933 = vpop.f32.mrf.mxu0
        %v934 = vadd.f32 %v821, %v933
        %v935 = vpop.f32.mrf.mxu0
        %936 = vmatprep.mubr.bf16.mxu0 0
        %937 = vmatmul.mubr.bf16.gmra.mxu0 %v861
        %v938 = vpop.f32.mrf.mxu0
        %v939 = vadd.f32 %v821, %v938
        %v940 = vpop.f32.mrf.mxu0
        %v941 = vpop.f32.mrf.mxu0
        %v942 = vadd.f32 %v821, %v941
        %v943 = vpop.f32.mrf.mxu0
        %944 = vmatprep.mubr.bf16.mxu0 0
        %945 = vmatmul.mubr.bf16.gmra.mxu0 %v864
        %v946 = vpop.f32.mrf.mxu0
        %v947 = vadd.f32 %v821, %v946
        %v948 = vpop.f32.mrf.mxu0
        %v949 = vpop.f32.mrf.mxu0
        %v950 = vadd.f32 %v821, %v949
        %v951 = vpop.f32.mrf.mxu0
        %952 = vmatprep.mubr.bf16.mxu0 0
        %953 = vmatmul.mubr.bf16.gmra.mxu0 %v867
        %v954 = vpop.f32.mrf.mxu0
        %v955 = vadd.f32 %v821, %v954
        %v956 = vpop.f32.mrf.mxu0
        %v957 = vpop.f32.mrf.mxu0
        %v958 = vadd.f32 %v821, %v957
        %v959 = vpop.f32.mrf.mxu0
        %960 = vmatprep.mubr.bf16.mxu0 0
        %961 = vmatmul.mubr.bf16.gmra.mxu0 %v870
        %v962 = vpop.f32.mrf.mxu0
        %v963 = vadd.f32 %v821, %v962
        %v964 = vpop.f32.mrf.mxu0
        %v965 = vpop.f32.mrf.mxu0
        %v966 = vadd.f32 %v821, %v965
        %v967 = vpop.f32.mrf.mxu0
        %968 = vdwg.mxu0
        %vm969 = vcmask 31744
        %970 = vst.msk [vmem:[%s285] sm:$0xff] %vm969, %v907
        %971 = vst.msk [vmem:[%s285 + $0x8] sm:$0xff] %vm969, %v910
        %972 = vst.msk [vmem:[%s285 + $0x10] sm:$0xff] %vm969, %v915
        %973 = vst.msk [vmem:[%s285 + $0x18] sm:$0xff] %vm969, %v918
        %974 = vst.msk [vmem:[%s285 + $0x20] sm:$0xff] %vm969, %v923
        %975 = vst.msk [vmem:[%s285 + $0x28] sm:$0xff] %vm969, %v926
        %976 = vst.msk [vmem:[%s285 + $0x30] sm:$0xff] %vm969, %v931
        %977 = vst.msk [vmem:[%s285 + $0x38] sm:$0xff] %vm969, %v934
        %978 = vst.msk [vmem:[%s285 + $0x40] sm:$0xff] %vm969, %v939
        %979 = vst.msk [vmem:[%s285 + $0x48] sm:$0xff] %vm969, %v942
        %980 = vst.msk [vmem:[%s285 + $0x50] sm:$0xff] %vm969, %v947
        %981 = vst.msk [vmem:[%s285 + $0x58] sm:$0xff] %vm969, %v950
        %982 = vst.msk [vmem:[%s285 + $0x60] sm:$0xff] %vm969, %v955
        %983 = vst.msk [vmem:[%s285 + $0x68] sm:$0xff] %vm969, %v958
        %984 = vst.msk [vmem:[%s285 + $0x70] sm:$0xff] %vm969, %v963
        %985 = vst.msk [vmem:[%s285 + $0x78] sm:$0xff] %vm969, %v966
        %s986 = sand.u32 %s178, 1
        %s987 = sand.u32 %s178, 1
        %s988 = smul.addr %s987, 128
        %s989 = scalar_lea.vmem [#allocation2], %s988
        // Predicated region
        $region49: #{prediction_model_forward.1} parent=47 // pred_check
          %p990 = pneg %p188
        $region50: #{prediction_model_forward.1} parent=47 // pred_check_branch
          %992 = sbr.rel (%p990) target = $region52
        $region51: #{prediction_model_forward.1} parent=47 // pred_region
          %s993 = smul.u32 16, %s18
          %s994 = ssub.s32 65, %s993
          %p995 = scmp.lt.s32.totalorder %s994, 16
          %s996 = scalar_select %p995, %s994, 16
          %s997 = smul.u32 128, %s996
          %p998 = scmp.ne.s32.totalorder 0, %s997
          %s999 = smul.addr %s993, 8
          %s1000 = scalar_lea.vmem %s7, %s999
          // Predicated region
          $region53: #{prediction_model_forward.1} parent=51 // pred_check
            %p1001 = pneg %p998
          $region54: #{prediction_model_forward.1} parent=51 // pred_check_branch
            %1003 = sbr.rel (%p1001) target = $region56
          $region55: #{prediction_model_forward.1} parent=51 // pred_region
            // Predicated region
            $region57: #{prediction_model_forward.1} parent=55 // pred_check
              _
            $region58: #{prediction_model_forward.1} parent=55 // pred_check_branch
              %1005 = sbr.rel (0) target = $region60
            $region59: #{prediction_model_forward.1} parent=55 // pred_region
              // Predicated region
              $region79: #{prediction_model_forward.1} parent=59 // pred_check
                _
              $region80: #{prediction_model_forward.1} parent=59 // pred_check_branch
                %1085 = sbr.rel (0) target = $region82
              $region81: #{prediction_model_forward.1} parent=59 // pred_region
                %s1086 = sshrl.u32 %s996, 4
                // While loop
                $region83: #{prediction_model_forward.1} parent=81 // loop_pre_header
                  _
                $region84: #{prediction_model_forward.1} parent=81 // loop_header
                  %s1088 = sphi 0, %s1090
                  %p1089 = scmp.ge.s32.totalorder %s1088, %s1086
                  %s1093 = sphi 0, %s1130
                  %s1094 = sphi %s989, %s1133
                  %s1095 = sphi %s1000, %s1134
                $region85: #{prediction_model_forward.1} parent=81 // loop_header_branch
                  %1092 = sbr.rel (%p1089) target = $region89
                $region86: #{prediction_model_forward.1} parent=81 // loop_body
                  %v1096 = vld [vmem:[%s1094] sm:$0xff]
                  %1097 = vst [vmem:[%s1095] sm:$0xff] %v1096
                  %v1098 = vld [vmem:[%s1094 + $0x8] sm:$0xff]
                  %1099 = vst [vmem:[%s1095 + $0x8] sm:$0xff] %v1098
                  %v1100 = vld [vmem:[%s1094 + $0x10] sm:$0xff]
                  %1101 = vst [vmem:[%s1095 + $0x10] sm:$0xff] %v1100
                  %v1102 = vld [vmem:[%s1094 + $0x18] sm:$0xff]
                  %1103 = vst [vmem:[%s1095 + $0x18] sm:$0xff] %v1102
                  %v1104 = vld [vmem:[%s1094 + $0x20] sm:$0xff]
                  %1105 = vst [vmem:[%s1095 + $0x20] sm:$0xff] %v1104
                  %v1106 = vld [vmem:[%s1094 + $0x28] sm:$0xff]
                  %1107 = vst [vmem:[%s1095 + $0x28] sm:$0xff] %v1106
                  %v1108 = vld [vmem:[%s1094 + $0x30] sm:$0xff]
                  %1109 = vst [vmem:[%s1095 + $0x30] sm:$0xff] %v1108
                  %v1110 = vld [vmem:[%s1094 + $0x38] sm:$0xff]
                  %1111 = vst [vmem:[%s1095 + $0x38] sm:$0xff] %v1110
                  %v1112 = vld [vmem:[%s1094 + $0x40] sm:$0xff]
                  %1113 = vst [vmem:[%s1095 + $0x40] sm:$0xff] %v1112
                  %v1114 = vld [vmem:[%s1094 + $0x48] sm:$0xff]
                  %1115 = vst [vmem:[%s1095 + $0x48] sm:$0xff] %v1114
                  %v1116 = vld [vmem:[%s1094 + $0x50] sm:$0xff]
                  %1117 = vst [vmem:[%s1095 + $0x50] sm:$0xff] %v1116
                  %v1118 = vld [vmem:[%s1094 + $0x58] sm:$0xff]
                  %1119 = vst [vmem:[%s1095 + $0x58] sm:$0xff] %v1118
                  %v1120 = vld [vmem:[%s1094 + $0x60] sm:$0xff]
                  %1121 = vst [vmem:[%s1095 + $0x60] sm:$0xff] %v1120
                  %v1122 = vld [vmem:[%s1094 + $0x68] sm:$0xff]
                  %1123 = vst [vmem:[%s1095 + $0x68] sm:$0xff] %v1122
                  %v1124 = vld [vmem:[%s1094 + $0x70] sm:$0xff]
                  %1125 = vst [vmem:[%s1095 + $0x70] sm:$0xff] %v1124
                  %v1126 = vld [vmem:[%s1094 + $0x78] sm:$0xff]
                  %1127 = vst [vmem:[%s1095 + $0x78] sm:$0xff] %v1126
                  %s1128 = sadd.s32 1, %s1093
                  %p1129 = scmp.ge.s32.totalorder %s1128, %s1086
                  %s1130 = scalar_select %p1129, 0, %s1128
                  %s1131 = smul.u32 %s1130, 128
                  %s1132 = smul.u32 %s1130, 128
                  %s1133 = scalar_lea.vmem %s989, %s1131 [#allocation2]
                  %s1134 = scalar_lea.vmem %s1000, %s1132
                $region87: #{prediction_model_forward.1} parent=81 // loop_footer
                  %s1090 = sadd.s32 %s1088, 1
                $region88: #{prediction_model_forward.1} parent=81 // loop_footer_branch
                  %1087 = sbr.rel target = $region84
                $region89: #{prediction_model_forward.1} parent=81 // loop_exit
                  _
                %s1135 = sshrl.u32 %s996, 4
                %s1136 = sand.u32 %s996, 15
                %s1137 = smul.u32 %s1135, 16
                %s1138 = smul.u32 8, %s1137
                %s1139 = scalar_lea.vmem %s989, %s1138 [#allocation2]
                %s1140 = smul.u32 8, %s1137
                %s1141 = scalar_lea.vmem %s1000, %s1140
                // While loop
                $region90: #{prediction_model_forward.1} parent=81 // loop_pre_header
                  _
                $region91: #{prediction_model_forward.1} parent=81 // loop_header
                  %s1143 = sphi 0, %s1145
                  %p1144 = scmp.ge.s32.totalorder %s1143, %s1136
                  %s1148 = sphi 0, %s1155
                  %s1149 = sphi %s1139, %s1158
                  %s1150 = sphi %s1141, %s1159
                $region92: #{prediction_model_forward.1} parent=81 // loop_header_branch
                  %1147 = sbr.rel (%p1144) target = $region96
                $region93: #{prediction_model_forward.1} parent=81 // loop_body
                  %v1151 = vld [vmem:[%s1149] sm:$0xff]
                  %1152 = vst [vmem:[%s1150] sm:$0xff] %v1151
                  %s1153 = sadd.s32 1, %s1148
                  %p1154 = scmp.ge.s32.totalorder %s1153, %s1136
                  %s1155 = scalar_select %p1154, 0, %s1153
                  %s1156 = smul.u32 %s1155, 8
                  %s1157 = smul.u32 %s1155, 8
                  %s1158 = scalar_lea.vmem %s1139, %s1156 [#allocation2]
                  %s1159 = scalar_lea.vmem %s1141, %s1157
                $region94: #{prediction_model_forward.1} parent=81 // loop_footer
                  %s1145 = sadd.s32 %s1143, 1
                $region95: #{prediction_model_forward.1} parent=81 // loop_footer_branch
                  %1142 = sbr.rel target = $region91
                $region96: #{prediction_model_forward.1} parent=81 // loop_exit
                  _
              $region82: #{prediction_model_forward.1} parent=59 // pred_fallthru
                _
              // Predicated region
              $region97: #{prediction_model_forward.1} parent=59 // pred_check
                _
              $region98: #{prediction_model_forward.1} parent=59 // pred_check_branch
                %1161 = sbr.rel target = $region100
              $region99: #{prediction_model_forward.1} parent=59 // pred_region
                _
              $region100: #{prediction_model_forward.1} parent=59 // pred_fallthru
                _
            $region60: #{prediction_model_forward.1} parent=55 // pred_fallthru
              _
            // Predicated region
            $region61: #{prediction_model_forward.1} parent=55 // pred_check
              _
            $region62: #{prediction_model_forward.1} parent=55 // pred_check_branch
              %1007 = sbr.rel target = $region64
            $region63: #{prediction_model_forward.1} parent=55 // pred_region
              %s1009 = ssub.s32 256, 1
              %s1010 = sshrl.u32 %s996, 4
              // While loop
              $region65: #{prediction_model_forward.1} parent=63 // loop_pre_header
                _
              $region66: #{prediction_model_forward.1} parent=63 // loop_header
                %s1012 = sphi 0, %s1014
                %p1013 = scmp.ge.s32.totalorder %s1012, %s1010
                %s1017 = sphi 0, %s1054
                %s1018 = sphi %s989, %s1057
                %s1019 = sphi %s1000, %s1058
              $region67: #{prediction_model_forward.1} parent=63 // loop_header_branch
                %1016 = sbr.rel (%p1013) target = $region71
              $region68: #{prediction_model_forward.1} parent=63 // loop_body
                %v1020 = vld [vmem:[%s1018] sm:%s1009]
                %1021 = vst [vmem:[%s1019] sm:%s1009] %v1020
                %v1022 = vld [vmem:[%s1018 + $0x8] sm:%s1009]
                %1023 = vst [vmem:[%s1019 + $0x8] sm:%s1009] %v1022
                %v1024 = vld [vmem:[%s1018 + $0x10] sm:%s1009]
                %1025 = vst [vmem:[%s1019 + $0x10] sm:%s1009] %v1024
                %v1026 = vld [vmem:[%s1018 + $0x18] sm:%s1009]
                %1027 = vst [vmem:[%s1019 + $0x18] sm:%s1009] %v1026
                %v1028 = vld [vmem:[%s1018 + $0x20] sm:%s1009]
                %1029 = vst [vmem:[%s1019 + $0x20] sm:%s1009] %v1028
                %v1030 = vld [vmem:[%s1018 + $0x28] sm:%s1009]
                %1031 = vst [vmem:[%s1019 + $0x28] sm:%s1009] %v1030
                %v1032 = vld [vmem:[%s1018 + $0x30] sm:%s1009]
                %1033 = vst [vmem:[%s1019 + $0x30] sm:%s1009] %v1032
                %v1034 = vld [vmem:[%s1018 + $0x38] sm:%s1009]
                %1035 = vst [vmem:[%s1019 + $0x38] sm:%s1009] %v1034
                %v1036 = vld [vmem:[%s1018 + $0x40] sm:%s1009]
                %1037 = vst [vmem:[%s1019 + $0x40] sm:%s1009] %v1036
                %v1038 = vld [vmem:[%s1018 + $0x48] sm:%s1009]
                %1039 = vst [vmem:[%s1019 + $0x48] sm:%s1009] %v1038
                %v1040 = vld [vmem:[%s1018 + $0x50] sm:%s1009]
                %1041 = vst [vmem:[%s1019 + $0x50] sm:%s1009] %v1040
                %v1042 = vld [vmem:[%s1018 + $0x58] sm:%s1009]
                %1043 = vst [vmem:[%s1019 + $0x58] sm:%s1009] %v1042
                %v1044 = vld [vmem:[%s1018 + $0x60] sm:%s1009]
                %1045 = vst [vmem:[%s1019 + $0x60] sm:%s1009] %v1044
                %v1046 = vld [vmem:[%s1018 + $0x68] sm:%s1009]
                %1047 = vst [vmem:[%s1019 + $0x68] sm:%s1009] %v1046
                %v1048 = vld [vmem:[%s1018 + $0x70] sm:%s1009]
                %1049 = vst [vmem:[%s1019 + $0x70] sm:%s1009] %v1048
                %v1050 = vld [vmem:[%s1018 + $0x78] sm:%s1009]
                %1051 = vst [vmem:[%s1019 + $0x78] sm:%s1009] %v1050
                %s1052 = sadd.s32 1, %s1017
                %p1053 = scmp.ge.s32.totalorder %s1052, %s1010
                %s1054 = scalar_select %p1053, 0, %s1052
                %s1055 = smul.u32 %s1054, 128
                %s1056 = smul.u32 %s1054, 128
                %s1057 = scalar_lea.vmem %s989, %s1055 [#allocation2]
                %s1058 = scalar_lea.vmem %s1000, %s1056
              $region69: #{prediction_model_forward.1} parent=63 // loop_footer
                %s1014 = sadd.s32 %s1012, 1
              $region70: #{prediction_model_forward.1} parent=63 // loop_footer_branch
                %1011 = sbr.rel target = $region66
              $region71: #{prediction_model_forward.1} parent=63 // loop_exit
                _
              %s1059 = sshrl.u32 %s996, 4
              %s1060 = sand.u32 %s996, 15
              %s1061 = smul.u32 %s1059, 16
              %s1062 = smul.u32 8, %s1061
              %s1063 = scalar_lea.vmem %s989, %s1062 [#allocation2]
              %s1064 = smul.u32 8, %s1061
              %s1065 = scalar_lea.vmem %s1000, %s1064
              // While loop
              $region72: #{prediction_model_forward.1} parent=63 // loop_pre_header
                _
              $region73: #{prediction_model_forward.1} parent=63 // loop_header
                %s1067 = sphi 0, %s1069
                %p1068 = scmp.ge.s32.totalorder %s1067, %s1060
                %s1072 = sphi 0, %s1079
                %s1073 = sphi %s1063, %s1082
                %s1074 = sphi %s1065, %s1083
              $region74: #{prediction_model_forward.1} parent=63 // loop_header_branch
                %1071 = sbr.rel (%p1068) target = $region78
              $region75: #{prediction_model_forward.1} parent=63 // loop_body
                %v1075 = vld [vmem:[%s1073] sm:%s1009]
                %1076 = vst [vmem:[%s1074] sm:%s1009] %v1075
                %s1077 = sadd.s32 1, %s1072
                %p1078 = scmp.ge.s32.totalorder %s1077, %s1060
                %s1079 = scalar_select %p1078, 0, %s1077
                %s1080 = smul.u32 %s1079, 8
                %s1081 = smul.u32 %s1079, 8
                %s1082 = scalar_lea.vmem %s1063, %s1080 [#allocation2]
                %s1083 = scalar_lea.vmem %s1065, %s1081
              $region76: #{prediction_model_forward.1} parent=63 // loop_footer
                %s1069 = sadd.s32 %s1067, 1
              $region77: #{prediction_model_forward.1} parent=63 // loop_footer_branch
                %1066 = sbr.rel target = $region73
              $region78: #{prediction_model_forward.1} parent=63 // loop_exit
                _
            $region64: #{prediction_model_forward.1} parent=55 // pred_fallthru
              _
          $region56: #{prediction_model_forward.1} parent=51 // pred_fallthru
            _
          %1162 = vnop
        $region52: #{prediction_model_forward.1} parent=47 // pred_fallthru
          _
      $region48: #{prediction_model_forward.1} parent=5 // pred_fallthru
        _
      %p1163 = scmp.le.s32.totalorder 2, %s13
      // Predicated region
      $region101: #{prediction_model_forward.1} parent=5 // pred_check
        %p1164 = pneg %p1163
      $region102: #{prediction_model_forward.1} parent=5 // pred_check_branch
        %1166 = sbr.rel (%p1164) target = $region104
      $region103: #{prediction_model_forward.1} parent=5 // pred_region
        %s1167 = ssub.s32 %s13, 2
        // Predicated region
        $region105: #{prediction_model_forward.1} parent=103 // pred_check
          %p1168 = pneg %p194
        $region106: #{prediction_model_forward.1} parent=103 // pred_check_branch
          %1170 = sbr.rel (%p1168) target = $region108
        $region107: #{prediction_model_forward.1} parent=103 // pred_region
          %s1171 = sand.u32 %s179, 1
          %s1172 = sand.u32 %s179, 1
          %s1173 = smul.addr %s1172, 128
          %s1174 = scalar_lea.vmem [#allocation2], %s1173
        $region108: #{prediction_model_forward.1} parent=103 // pred_fallthru
          _
      $region104: #{prediction_model_forward.1} parent=5 // pred_fallthru
        _
    $region6: #{prediction_model_forward.1} parent=1 // loop_footer
      %s17 = sadd.s32 1, %s13
    $region7: #{prediction_model_forward.1} parent=1 // loop_footer_branch
      %12 = sbr.rel target = $region3
    $region8: #{prediction_model_forward.1} parent=1 // loop_exit
      _

</llo_original>
